<compile_context>
chip_gen: v6e
topology: v6e:2x2x1
jax: 0.10.0
libtpu: 0.0.40
codegen_flags: <defaults>
</compile_context>

<pallas_src>
import jax
import jax.numpy as jnp
from jax.experimental import pallas as pl
from jax.experimental.pallas import tpu as pltpu

# ---- small synthetic config (stands in for lfd_params) ----------------------
NUM_FRAMES = 8          # lfd_params.model.iad_frames
NUM_FEATURES = 32       # lfd_params.model.bottleneck_size (LINEAR_IAD -> use_bottleneck)
OUTPUT_SIZE = 4         # len(lfd_params.application.obs_label_list)
HISTORY = 2             # x.shape[0] (policy_learn_ext=False)

INPUT_SIZE = NUM_FEATURES * NUM_FRAMES   # 256: SpatialExtLinear input_size (lane-aligned)

# TPU tile geometry / tiling constants
LANE = 128
O_PAD = ((OUTPUT_SIZE + LANE - 1) // LANE) * LANE   # 4 -> 128 (lane-dense output/weight)
TILE_M = 128                                        # M tile for the batched (gridded) path


# ---- Pallas kernel: SpatialExtLinear hot path (matmul + bias) ----------------
def spatial_linear_kernel(x_ref, w_ref, b_ref, o_ref):
    # x_ref: (tm, F) bf16   w_ref: (F, O_pad) bf16   b_ref: (1, O_pad) f32
    # o_ref: (tm, O_pad) f32
    acc = jnp.dot(x_ref[...], w_ref[...], preferred_element_type=jnp.float32)
    o_ref[...] = (acc + b_ref[...]).astype(o_ref.dtype)


def spatial_ext_linear(x_flat, w_pad, b_pad):
    """y = x_flat @ W + b.  Gridless single tile for small H, gridded over M
    (weight/bias VMEM-resident) once batched."""
    H, F = x_flat.shape
    O_pad = w_pad.shape[1]

    cost = pl.CostEstimate(
        flops=2 * H * F * OUTPUT_SIZE,
        transcendentals=0,
        bytes_accessed=(2 * H * F + 2 * F * OUTPUT_SIZE
                        + 4 * OUTPUT_SIZE + 4 * H * OUTPUT_SIZE),
    )

    if H <= TILE_M:
        # Single VMEM tile, no grid: block == full array dims satisfies the
        # (8,128) rule; Mosaic sublane-pads during the DMA (no wrapper-side
        # zero-pad copy, no extra HBM round trip).
        vmem = pl.BlockSpec(memory_space=pltpu.MemorySpace.VMEM)
        out = pl.pallas_call(
            spatial_linear_kernel,
            out_shape=jax.ShapeDtypeStruct((H, O_pad), jnp.float32),
            in_specs=[vmem, vmem, vmem],
            out_specs=vmem,
            cost_estimate=cost,
        )(x_flat, w_pad, b_pad)
    else:
        # Batched path: grid over the M axis.  Weight and bias use a constant
        # index_map so they stay VMEM-resident (DMA'd once per call, not per
        # step); the M axis is "parallel" so v7x's 2 TensorCores can share it.
        grid = (pl.cdiv(H, TILE_M),)
        out = pl.pallas_call(
            spatial_linear_kernel,
            out_shape=jax.ShapeDtypeStruct((H, O_pad), jnp.float32),
            grid=grid,
            in_specs=[
                pl.BlockSpec((TILE_M, F), lambda i: (i, 0)),
                pl.BlockSpec((F, O_pad), lambda i: (0, 0)),   # resident weight
                pl.BlockSpec((1, O_pad), lambda i: (0, 0)),   # resident bias
            ],
            out_specs=pl.BlockSpec((TILE_M, O_pad), lambda i: (i, 0)),
            compiler_params=pltpu.CompilerParams(
                dimension_semantics=("parallel",),
            ),
            cost_estimate=cost,
        )(x_flat, w_pad, b_pad)

    return out


# ---- Classifier.forward ------------------------------------------------------
@jax.jit
def classifier_forward(x, params):
    # use_spatial=True, policy_learn_ext=False
    history_length = x.shape[0]
    # x = x.view(history_length, -1, self.num_features)
    x = x.reshape(history_length, -1, NUM_FEATURES)
    # SpatialExtLinear, consensus='flat': flatten frame/feature dims, then Linear.
    # Activations cast to bf16 (f32 accumulation inside the kernel).
    x_flat = x.reshape(history_length, -1).astype(jnp.bfloat16)
    out = spatial_ext_linear(x_flat, params["w_pad"], params["b_pad"])
    # reshape_output=True -> (history_length, output_size); drop padded lanes.
    return out[:, :OUTPUT_SIZE].reshape(history_length, OUTPUT_SIZE)


# ---- deterministic parameter init (synthetic, no checkpoint load) -----------
def init_params(key):
    kw, kb = jax.random.split(key)
    bound = 1.0 / jnp.sqrt(INPUT_SIZE)
    # stored as (in, out) so the kernel does x @ W directly (== x @ W_torch.T)
    w = jax.random.uniform(kw, (INPUT_SIZE, OUTPUT_SIZE), jnp.float32, -bound, bound)
    b = jax.random.uniform(kb, (OUTPUT_SIZE,), jnp.float32, -bound, bound)
    # Pad ONCE to the lane-dense layout; weight stored in bf16 (halves the
    # dominant weight DMA, native MXU dtype), bias kept f32 for the VPU add.
    w_pad = (jnp.zeros((INPUT_SIZE, O_PAD), jnp.float32)
             .at[:, :OUTPUT_SIZE].set(w)
             .astype(jnp.bfloat16))
    b_pad = jnp.zeros((1, O_PAD), jnp.float32).at[0, :OUTPUT_SIZE].set(b)
    return {"w_pad": w_pad, "b_pad": b_pad}


def _reference(x, params):
    w = params["w_pad"][:, :OUTPUT_SIZE].astype(jnp.float32)
    b = params["b_pad"][0, :OUTPUT_SIZE]
    return x.reshape(x.shape[0], -1) @ w + b[None, :]


if __name__ == "__main__":
    key = jax.random.PRNGKey(0)
    kx, kb, kp = jax.random.split(key, 3)
    params = init_params(kp)

    # IAD-style input: (history, frames, features).  Values are rounded to
    # bf16-representable f32 so the in-kernel bf16 cast is lossless and the
    # plain-f32 reference is directly comparable.
    x = jax.random.normal(kx, (HISTORY, NUM_FRAMES, NUM_FEATURES), jnp.float32)
    x = x.astype(jnp.bfloat16).astype(jnp.float32)

    out = jax.block_until_ready(classifier_forward(x, params))
    ref = _reference(x, params)
    assert out.shape == (HISTORY, OUTPUT_SIZE)
    assert jnp.allclose(out, ref, atol=1e-4, rtol=1e-4)

    # Batched path: many histories/timesteps in one call (amortizes launch/DMA
    # cost, fills the MXU, exercises the gridded / weight-resident kernel).
    H_BATCH = 256
    xb = jax.random.normal(kb, (H_BATCH, NUM_FRAMES, NUM_FEATURES), jnp.float32)
    xb = xb.astype(jnp.bfloat16).astype(jnp.float32)

    out_b = jax.block_until_ready(classifier_forward(xb, params))
    ref_b = _reference(xb, params)
    assert out_b.shape == (H_BATCH, OUTPUT_SIZE)
    assert jnp.allclose(out_b, ref_b, atol=1e-4, rtol=1e-4)

    print("KERNEL_OK")
</pallas_src>

<mosaic_0001>
module attributes {stable_mosaic.version = 11 : i64} {
  func.func @spatial_linear_kernel(%arg0: memref<2x256xbf16, #tpu.memory_space<vmem>>, %arg1: memref<256x128xbf16, #tpu.memory_space<vmem>>, %arg2: memref<1x128xf32, #tpu.memory_space<vmem>>, %arg3: memref<2x128xf32, #tpu.memory_space<vmem>>) attributes {dimension_semantics = [], scalar_prefetch = 0 : i64, scratch_operands = 0 : i64, tpu.core_type = #tpu.core_type<tc>} {
    %c0 = arith.constant 0 : index
    %c0_0 = arith.constant 0 : index
    %0 = vector.load %arg0[%c0, %c0_0] : memref<2x256xbf16, #tpu.memory_space<vmem>>, vector<2x256xbf16>
    %c0_1 = arith.constant 0 : index
    %c0_2 = arith.constant 0 : index
    %1 = vector.load %arg1[%c0_1, %c0_2] : memref<256x128xbf16, #tpu.memory_space<vmem>>, vector<256x128xbf16>
    %cst = arith.constant dense<0.000000e+00> : vector<2x128xf32>
    %2 = tpu.matmul %0, %1, %cst {dimension_numbers = #tpu.dot_dimension_numbers<[1], [0], [0], [1], [0, 0, 1, 1], [], []>} : vector<2x256xbf16>, vector<256x128xbf16>, vector<2x128xf32> -> vector<2x128xf32>
    %c0_3 = arith.constant 0 : index
    %c0_4 = arith.constant 0 : index
    %3 = vector.load %arg2[%c0_3, %c0_4] : memref<1x128xf32, #tpu.memory_space<vmem>>, vector<1x128xf32>
    %4 = vector.broadcast %3 : vector<1x128xf32> to vector<2x128xf32>
    %5 = arith.addf %2, %4 : vector<2x128xf32>
    %c0_5 = arith.constant 0 : index
    %c0_6 = arith.constant 0 : index
    %6 = vector.load %arg3[%c0_5, %c0_6] : memref<2x128xf32, #tpu.memory_space<vmem>>, vector<2x128xf32>
    tpu.vector_store %arg3[%c0_5, %c0_6], %5 {strides = array<i32>} : memref<2x128xf32, #tpu.memory_space<vmem>>, vector<2x128xf32>,
    return
  }
}

</mosaic_0001>

<llo_original>
// kernel: classifier_forward.1
$region0: #{classifier_forward.1}
  #allocation0 [shape = 'u32[]', space=smem, size = 0x4, offset = 0x4, fixed_abs, tag = 'smem constant byte address 0x4 - core index']
  #allocation1 [shape = 'u32[144,128]{1,0:T(1,128)}', space=vmem, size = 0x12000, scoped, tag = 'internal scratch']
  %s0 = inlined_call_operand.vmem [shape: bf16[2,256], index: 0, kind: input, shape index: {}]
  %s1 = inlined_call_operand.hbm [shape: bf16[256,128], index: 1, kind: input, shape index: {}]
  %s2 = inlined_call_operand.vmem [shape: f32[1,128], index: 2, kind: input, shape index: {}]
  %s3 = inlined_call_operand.hbm [shape: f32[2,128], index: 3, kind: output, shape index: {}]
  %s4 = sld [smem:[#allocation0]]
  $region26: #{classifier_forward.1} parent=0
    _
  %s6 = ssub.s32 1, %s4
  %s7 = scalar_select 0, %s6, %s4
  $region1: #{classifier_forward.1} parent=0
    #allocation2 [shape = 'u8[65536]{0}', space=vmem, size = 0x10000, scoped, tag = 'input window, operand 1, single buffered']
    #allocation3 [shape = 's32[1]{0}', space=sflag, size = 0x4, scoped, tag = 'scoped memory for classifier_forward.1']
    #allocation4 [shape = 's32[1]{0}', space=sflag, size = 0x4, scoped, tag = 'scoped memory for classifier_forward.1']
    #allocation5 [shape = 'u8[1024]{0}', space=vmem, size = 0x400, scoped, tag = 'output window, operand 0, single buffered']
    %8 = vsyncpa [#allocation3], 0
    %9 = vsyncpa [#allocation4], 0
    // Predicated region
    $region2: #{classifier_forward.1} parent=1 // pred_check
      _
    $region3: #{classifier_forward.1} parent=1 // pred_check_branch
      %11 = sbr.rel (0) target = $region5
    $region4: #{classifier_forward.1} parent=1 // pred_region
      _
    $region5: #{classifier_forward.1} parent=1 // pred_fallthru
      _
    // Predicated region
    $region6: #{classifier_forward.1} parent=1 // pred_check
      _
    $region7: #{classifier_forward.1} parent=1 // pred_check_branch
      %13 = sbr.rel (0) target = $region9
    $region8: #{classifier_forward.1} parent=1 // pred_region
      %s15 = ssub.s32 2048, 2048
      %16 = vsyncadd [#allocation3], %s15
      %s17 = sshll.u32 [#allocation2], 4
      %s18 = int_to_ptr.vmem [resolvable:$true] %s17
      %23 = dma.hbm_to_vmem [thread:$0]  %s1, 2048, %s18, [#allocation3], 64, 64, 4
    $region9: #{classifier_forward.1} parent=1 // pred_fallthru
      _
    // Predicated region
    $region10: #{classifier_forward.1} parent=1 // pred_check
      _
    $region11: #{classifier_forward.1} parent=1 // pred_check_branch
      %25 = sbr.rel (0) target = $region13
    $region12: #{classifier_forward.1} parent=1 // pred_region
      _
    $region13: #{classifier_forward.1} parent=1 // pred_fallthru
      _
    // Predicated region
    $region14: #{classifier_forward.1} parent=1 // pred_check
      _
    $region15: #{classifier_forward.1} parent=1 // pred_check_branch
      %27 = sbr.rel (0) target = $region17
    $region16: #{classifier_forward.1} parent=1 // pred_region
      %28 = dma.done [#allocation3], 2048
    $region17: #{classifier_forward.1} parent=1 // pred_fallthru
      _
    %v30 = vld [vmem:[%s0] sm:$0x3]
    %v31 = vld [vmem:[#allocation2] sm:$0xf]
    %v32 = vld [vmem:[#allocation2 + $0x4] sm:$0xf]
    %v33 = vld [vmem:[#allocation2 + $0x8] sm:$0xf]
    %v34 = vld [vmem:[#allocation2 + $0xc] sm:$0xf]
    %v35 = vld [vmem:[#allocation2 + $0x10] sm:$0xf]
    %v36 = vld [vmem:[#allocation2 + $0x14] sm:$0xf]
    %v37 = vld [vmem:[#allocation2 + $0x18] sm:$0xf]
    %v38 = vld [vmem:[#allocation2 + $0x1c] sm:$0xf]
    %v39 = vld [vmem:[#allocation2 + $0x20] sm:$0xf]
    %v40 = vld [vmem:[#allocation2 + $0x24] sm:$0xf]
    %v41 = vld [vmem:[#allocation2 + $0x28] sm:$0xf]
    %v42 = vld [vmem:[#allocation2 + $0x2c] sm:$0xf]
    %v43 = vld [vmem:[#allocation2 + $0x30] sm:$0xf]
    %v44 = vld [vmem:[#allocation2 + $0x34] sm:$0xf]
    %v45 = vld [vmem:[#allocation2 + $0x38] sm:$0xf]
    %v46 = vld [vmem:[#allocation2 + $0x3c] sm:$0xf]
    %v47 = vld [vmem:[#allocation2 + $0x40] sm:$0xf]
    %v48 = vld [vmem:[#allocation2 + $0x44] sm:$0xf]
    %v49 = vld [vmem:[#allocation2 + $0x48] sm:$0xf]
    %v50 = vld [vmem:[#allocation2 + $0x4c] sm:$0xf]
    %v51 = vld [vmem:[#allocation2 + $0x50] sm:$0xf]
    %v52 = vld [vmem:[#allocation2 + $0x54] sm:$0xf]
    %v53 = vld [vmem:[#allocation2 + $0x58] sm:$0xf]
    %v54 = vld [vmem:[#allocation2 + $0x5c] sm:$0xf]
    %v55 = vld [vmem:[#allocation2 + $0x60] sm:$0xf]
    %v56 = vld [vmem:[#allocation2 + $0x64] sm:$0xf]
    %v57 = vld [vmem:[#allocation2 + $0x68] sm:$0xf]
    %v58 = vld [vmem:[#allocation2 + $0x6c] sm:$0xf]
    %v59 = vld [vmem:[#allocation2 + $0x70] sm:$0xf]
    %v60 = vld [vmem:[#allocation2 + $0x74] sm:$0xf]
    %v61 = vld [vmem:[#allocation2 + $0x78] sm:$0xf]
    %v62 = vld [vmem:[#allocation2 + $0x7c] sm:$0xf]
    %v63 = vld [vmem:[%s2] sm:$0x1]
    %v65 = vlaneseq
    %v66 = vshrl.u32 %v65, 7
    %v67 = vsub.s32 0, %v66
    %v68 = vrot.slane %v63, %v67
    %v72 = vunpack.c.l.s4 1966171168
    %v73 = vunpack.c.0.s8 %v72
    %v74 = vlaneseq
    %v75 = vshrl.u32 %v74, 7
    %v76 = vsub.s32 %v73, %v75
    %v77 = vrot.slane %v30, %v76
    %v78 = vcombine.high %v77, %v77
    %v80 = vunpack.c.l.s4 1966171168
    %v81 = vunpack.c.0.s8 %v80
    %v82 = vlaneseq
    %v83 = vshrl.u32 %v82, 7
    %v84 = vsub.s32 %v81, %v83
    %v85 = vrot.slane %v77, %v84
    %v87 = vunpack.c.l.s4 1966171168
    %v88 = vunpack.c.0.s8 %v87
    %v89 = vlaneseq
    %v90 = vshrl.u32 %v89, 7
    %v91 = vsub.s32 %v88, %v90
    %v92 = vrot.slane %v78, %v91
    %v127 = vunpack.c.l.b16 %v31
    %v128 = vunpack.c.l.b16 %v32
    %v129 = vunpack.c.l.b16 %v33
    %v130 = vunpack.c.l.b16 %v34
    %v131 = vunpack.c.l.b16 %v35
    %v132 = vunpack.c.l.b16 %v36
    %v133 = vunpack.c.l.b16 %v37
    %v134 = vunpack.c.l.b16 %v38
    %v135 = vunpack.c.l.b16 %v39
    %v136 = vunpack.c.l.b16 %v40
    %v137 = vunpack.c.l.b16 %v41
    %v138 = vunpack.c.l.b16 %v42
    %v139 = vunpack.c.l.b16 %v43
    %v140 = vunpack.c.l.b16 %v44
    %v141 = vunpack.c.l.b16 %v45
    %v142 = vunpack.c.l.b16 %v46
    %v143 = vunpack.c.l.b16 %v47
    %v144 = vunpack.c.l.b16 %v48
    %v145 = vunpack.c.l.b16 %v49
    %v146 = vunpack.c.l.b16 %v50
    %v147 = vunpack.c.l.b16 %v51
    %v148 = vunpack.c.l.b16 %v52
    %v149 = vunpack.c.l.b16 %v53
    %v150 = vunpack.c.l.b16 %v54
    %v151 = vunpack.c.l.b16 %v55
    %v152 = vunpack.c.l.b16 %v56
    %v153 = vunpack.c.l.b16 %v57
    %v154 = vunpack.c.l.b16 %v58
    %v155 = vunpack.c.l.b16 %v59
    %v156 = vunpack.c.l.b16 %v60
    %v157 = vunpack.c.l.b16 %v61
    %v158 = vunpack.c.l.b16 %v62
    %v159 = vpack.c.b16 %v128, %v127
    %v160 = vpack.c.b16 %v130, %v129
    %v161 = vpack.c.b16 %v132, %v131
    %v162 = vpack.c.b16 %v134, %v133
    %v163 = vpack.c.b16 %v136, %v135
    %v164 = vpack.c.b16 %v138, %v137
    %v165 = vpack.c.b16 %v140, %v139
    %v166 = vpack.c.b16 %v142, %v141
    %v167 = vpack.c.b16 %v144, %v143
    %v168 = vpack.c.b16 %v146, %v145
    %v169 = vpack.c.b16 %v148, %v147
    %v170 = vpack.c.b16 %v150, %v149
    %v171 = vpack.c.b16 %v152, %v151
    %v172 = vpack.c.b16 %v154, %v153
    %v173 = vpack.c.b16 %v156, %v155
    %v174 = vpack.c.b16 %v158, %v157
    %191 = vmatprep.subr.bf16.mxu0 0
    %192 = vmatpush1.bf16.msra.mxu0 %v166
    %193 = vmatprep.subr.bf16.mxu0 0
    %194 = vmatpush1.bf16.msra.mxu0 %v165
    %195 = vmatprep.subr.bf16.mxu0 0
    %196 = vmatpush1.bf16.msra.mxu0 %v164
    %197 = vmatprep.subr.bf16.mxu0 0
    %198 = vmatpush1.bf16.msra.mxu0 %v163
    %199 = vmatprep.subr.bf16.mxu0 0
    %200 = vmatpush1.bf16.msra.mxu0 %v162
    %201 = vmatprep.subr.bf16.mxu0 0
    %202 = vmatpush1.bf16.msra.mxu0 %v161
    %203 = vmatprep.subr.bf16.mxu0 0
    %204 = vmatpush1.bf16.msra.mxu0 %v160
    %205 = vmatprep.subr.bf16.mxu0 0
    %206 = vmatpush1.bf16.msra.mxu0 %v159
    %207 = vmatprep.subr.bf16.mxu0 0
    %208 = vmatpush2.bf16.msra.mxu0 %v174
    %209 = vmatprep.subr.bf16.mxu0 0
    %210 = vmatpush2.bf16.msra.mxu0 %v173
    %211 = vmatprep.subr.bf16.mxu0 0
    %212 = vmatpush2.bf16.msra.mxu0 %v172
    %213 = vmatprep.subr.bf16.mxu0 0
    %214 = vmatpush2.bf16.msra.mxu0 %v171
    %215 = vmatprep.subr.bf16.mxu0 0
    %216 = vmatpush2.bf16.msra.mxu0 %v170
    %217 = vmatprep.subr.bf16.mxu0 0
    %218 = vmatpush2.bf16.msra.mxu0 %v169
    %219 = vmatprep.subr.bf16.mxu0 0
    %220 = vmatpush2.bf16.msra.mxu0 %v168
    %221 = vmatprep.subr.bf16.mxu0 0
    %222 = vmatpush2.bf16.msra.mxu0 %v167
    %223 = vmatprep.mubr.bf16.mxu0 %v92
    %224 = vmatmul.mubr.bf16.gmra.mxu0 %v85
    %v225 = vpop.f32.mrf.mxu0
    %v226 = vadd.f32 %v68, %v225
    %v227 = vpop.f32.mrf.mxu0
    %v228 = vpop.f32.mrf.mxu0
    %v229 = vpop.f32.mrf.mxu0
    %230 = vdwg.mxu0
    %231 = vst [vmem:[#allocation5] sm:$0x3] %v226
    // Predicated region
    $region18: #{classifier_forward.1} parent=1 // pred_check
      _
    $region19: #{classifier_forward.1} parent=1 // pred_check_branch
      %233 = sbr.rel (0) target = $region21
    $region20: #{classifier_forward.1} parent=1 // pred_region
      %s235 = ssub.s32 32, 32
      %236 = vsyncadd [#allocation4], %s235
      %s238 = sshll.u32 [#allocation5], 4
      %s239 = int_to_ptr.vmem [resolvable:$true] %s238
      %241 = dma.vmem_to_hbm [thread:$0]  %s239, 32, %s3, [#allocation4]
    $region21: #{classifier_forward.1} parent=1 // pred_fallthru
      _
    // Predicated region
    $region22: #{classifier_forward.1} parent=1 // pred_check
      _
    $region23: #{classifier_forward.1} parent=1 // pred_check_branch
      %243 = sbr.rel (0) target = $region25
    $region24: #{classifier_forward.1} parent=1 // pred_region
      %244 = dma.done [#allocation4], 32
    $region25: #{classifier_forward.1} parent=1 // pred_fallthru
      _
    %245 = vsyncpa [#allocation3], 1
    %246 = vsyncpa [#allocation4], 1

</llo_original>
